<compile_context>
chip_gen: v5e
topology: v5e:2x2
jax: 0.10.0
libtpu: 0.0.40
codegen_flags: <defaults>
</compile_context>

<pallas_src>
import functools

import jax
import jax.numpy as jnp
from jax.experimental import pallas as pl
from jax.experimental.pallas import tpu as pltpu


# --------------------------------------------------------------------------
# helpers
# --------------------------------------------------------------------------
def make_inv_freq(dim, base=10000.0):
    """1.0 / base ** (arange(0, dim, 2) / dim)  (matches the PyTorch buffer)."""
    return 1.0 / (base ** (jnp.arange(0, dim, 2, dtype=jnp.float32) / dim))


def _pick_tile(total, max_tile):
    """Largest tile <= max_tile that divides `total` and is a multiple of 8,
    or the full extent if no tiling is needed/possible."""
    if total <= max_tile:
        return total
    start = max_tile - (max_tile % 8)
    for cand in range(start, 7, -8):
        if total % cand == 0:
            return cand
    return total  # no clean tiling found -> single block (still correct)


# Per-step VMEM: 2 outputs x 2 pipeline buffers x tile x 128 lanes x 4B <= ~8 MiB,
# comfortable under every scoped-VMEM default (16 MiB v5e / 32 MiB v6e / 32 MiB v7x).
_MAX_TILE_ROWS = 2048


# --------------------------------------------------------------------------
# lane-dense kernel: default positions generated in-kernel
# --------------------------------------------------------------------------
def _rope_dense_kernel(const_ref, cos_ref, sin_ref, *, per_row, tile_rows):
    # const_ref : (2, 128) f32
    #   row 0: inv_freq[(lane % dim) % (dim//2)]   (doubled freq table tiled over lanes)
    #   row 1: (lane // dim) * row0                (per-lane position offset pre-multiplied)
    # cos/sin  : (tile_rows, 128) lane-dense output slab.
    base = (pl.program_id(1) * (tile_rows * per_row)).astype(jnp.float32)
    r = jax.lax.broadcasted_iota(jnp.int32, (tile_rows, 128), 0).astype(jnp.float32)
    row_pos = base + r * jnp.float32(per_row)          # position of lane 0 in each row
    # emb[r, lane] = (row_pos + lane//dim) * inv_freq[(lane % dim) % (dim//2)]
    emb = row_pos * const_ref[0:1, :] + const_ref[1:2, :]   # VPU
    cos_ref[...] = jnp.cos(emb).astype(cos_ref.dtype)       # EUP
    sin_ref[...] = jnp.sin(emb).astype(sin_ref.dtype)       # EUP


# --------------------------------------------------------------------------
# fallback kernel: explicit position_ids (L-tiled broadcast multiply)
# --------------------------------------------------------------------------
def _rope_pos_kernel(pos_ref, invf_ref, cos_ref, sin_ref):
    # pos_ref : (tile_L, 1)  f32 positions
    # invf_ref: (1, dim)     f32 doubled inverse frequencies [inv_freq, inv_freq]
    emb = pos_ref[...] * invf_ref[...]                 # (tile_L, dim) broadcast product
    cos_ref[...] = jnp.cos(emb).astype(cos_ref.dtype)
    sin_ref[...] = jnp.sin(emb).astype(sin_ref.dtype)


# --------------------------------------------------------------------------
# wrapper
# --------------------------------------------------------------------------
def rotary_embedding(x, inv_freq, position_ids=None):
    """x: (B, NH, L, ...) -- only shapes/dtype of x are used (L taken from axis 2)."""
    assert x.ndim >= 3, "x must have a sequence axis at dim 2, e.g. (B, NH, L, HD)"
    B = x.shape[0]
    L = x.shape[2]
    half = inv_freq.shape[0]
    dim = half * 2
    out_dtype = x.dtype
    out_bytes = 2 * B * L * dim * jnp.dtype(out_dtype).itemsize

    lane_dense_ok = (
        position_ids is None and dim <= 128 and 128 % dim == 0 and (L * dim) % 128 == 0
    )

    if lane_dense_ok:
        # ------------------ lane-dense default-position path ------------------
        per_row = 128 // dim                 # sequence positions packed per 128-lane row
        rows = (L * dim) // 128              # lane-dense rows per batch element
        tile_rows = _pick_tile(rows, _MAX_TILE_ROWS)
        n_tiles = rows // tile_rows

        lane = jnp.arange(128, dtype=jnp.int32)
        invf_tile = inv_freq.astype(jnp.float32)[(lane % dim) % half]        # (128,)
        lane_off = (lane // dim).astype(jnp.float32)
        const = jnp.stack([invf_tile, lane_off * invf_tile], axis=0)         # (2, 128)

        kern = functools.partial(_rope_dense_kernel, per_row=per_row, tile_rows=tile_rows)
        cost = pl.CostEstimate(
            flops=3 * B * L * dim,
            transcendentals=2 * B * L * dim,
            bytes_accessed=out_bytes + const.size * 4,
        )
        cos, sin = pl.pallas_call(
            kern,
            grid=(B, n_tiles),
            in_specs=[pl.BlockSpec((2, 128), lambda b, lt: (0, 0))],
            out_specs=(
                pl.BlockSpec((None, tile_rows, 128), lambda b, lt: (b, lt, 0)),
                pl.BlockSpec((None, tile_rows, 128), lambda b, lt: (b, lt, 0)),
            ),
            out_shape=(
                jax.ShapeDtypeStruct((B, rows, 128), out_dtype),
                jax.ShapeDtypeStruct((B, rows, 128), out_dtype),
            ),
            compiler_params=pltpu.CompilerParams(
                dimension_semantics=("parallel", "parallel")),
            cost_estimate=cost,
        )(const)
        # Contiguous repack back to (B, L, dim) -- wrapper-level reshape, not in-kernel.
        return cos.reshape(B, L, dim), sin.reshape(B, L, dim)

    # ------------------ explicit position_ids (or awkward dim) fallback ------------------
    if position_ids is None:
        position_ids = jnp.broadcast_to(jnp.arange(L, dtype=jnp.int32)[None, :], (B, L))
    pos = position_ids.astype(jnp.float32).reshape(B, L, 1)
    invf2 = jnp.concatenate([inv_freq, inv_freq], axis=0).reshape(1, dim).astype(jnp.float32)

    # 2 outputs x 2 buffers x tile_L x dim x 4B <= ~8 MiB.
    max_tile_l = max(8, min(2048, (8 * 1024 * 1024) // (16 * dim)))
    tile_l = _pick_tile(L, max_tile_l)
    n_tiles = L // tile_l

    cost = pl.CostEstimate(
        flops=2 * B * L * dim,
        transcendentals=2 * B * L * dim,
        bytes_accessed=out_bytes + B * L * 4 + dim * 4,
    )
    cos, sin = pl.pallas_call(
        _rope_pos_kernel,
        grid=(B, n_tiles),
        in_specs=[
            pl.BlockSpec((None, tile_l, 1), lambda b, lt: (b, lt, 0)),
            pl.BlockSpec((1, dim), lambda b, lt: (0, 0)),
        ],
        out_specs=(
            pl.BlockSpec((None, tile_l, dim), lambda b, lt: (b, lt, 0)),
            pl.BlockSpec((None, tile_l, dim), lambda b, lt: (b, lt, 0)),
        ),
        out_shape=(
            jax.ShapeDtypeStruct((B, L, dim), out_dtype),
            jax.ShapeDtypeStruct((B, L, dim), out_dtype),
        ),
        compiler_params=pltpu.CompilerParams(
            dimension_semantics=("parallel", "parallel")),
        cost_estimate=cost,
    )(pos, invf2)
    return cos, sin


rotary_embedding_jit = jax.jit(rotary_embedding)


# --------------------------------------------------------------------------
# main
# --------------------------------------------------------------------------
if __name__ == "__main__":
    B, NH, L, HD = 2, 4, 16, 32          # x: (batch, heads, seq, head_dim); rope dim = HD
    key = jax.random.PRNGKey(0)
    x = jax.random.normal(key, (B, NH, L, HD), dtype=jnp.float32)

    inv_freq = make_inv_freq(HD)         # (HD // 2,)

    # ---- default-position path (lane-dense, in-kernel iota) ----
    cos, sin = jax.block_until_ready(rotary_embedding_jit(x, inv_freq))

    pos_ref = jnp.broadcast_to(jnp.arange(L, dtype=jnp.float32)[None, :], (B, L))
    freqs_ref = pos_ref[:, :, None] * inv_freq[None, None, :]
    emb_ref = jnp.concatenate([freqs_ref, freqs_ref], axis=-1)
    cos_ref = jnp.cos(emb_ref).astype(x.dtype)
    sin_ref = jnp.sin(emb_ref).astype(x.dtype)

    assert cos.shape == (B, L, HD) and sin.shape == (B, L, HD)
    assert bool(jnp.all(jnp.isfinite(cos))) and bool(jnp.all(jnp.isfinite(sin)))
    assert bool(jnp.allclose(cos, cos_ref, atol=1e-3, rtol=1e-3))
    assert bool(jnp.allclose(sin, sin_ref, atol=1e-3, rtol=1e-3))

    # ---- explicit position_ids path ----
    pos_ids = jnp.broadcast_to(jnp.arange(L, dtype=jnp.int32)[None, :] + 3, (B, L))
    cos2, sin2 = jax.block_until_ready(rotary_embedding_jit(x, inv_freq, pos_ids))
    freqs2 = pos_ids.astype(jnp.float32)[:, :, None] * inv_freq[None, None, :]
    emb2 = jnp.concatenate([freqs2, freqs2], axis=-1)
    assert bool(jnp.allclose(cos2, jnp.cos(emb2).astype(x.dtype), atol=1e-3, rtol=1e-3))
    assert bool(jnp.allclose(sin2, jnp.sin(emb2).astype(x.dtype), atol=1e-3, rtol=1e-3))

    print("KERNEL_OK")
</pallas_src>

<mosaic_0001>
module attributes {stable_mosaic.version = 11 : i64} {
  func.func @_rope_dense_kernel(%arg0: i32, %arg1: i32, %arg2: memref<2x128xf32, #tpu.memory_space<vmem>>, %arg3: memref<1x4x128xf32, #tpu.memory_space<vmem>>, %arg4: memref<1x4x128xf32, #tpu.memory_space<vmem>>) attributes {dimension_semantics = [#tpu.dimension_semantics<parallel>, #tpu.dimension_semantics<parallel>], iteration_bounds = array<i64: 2, 1>, scalar_prefetch = 0 : i64, scratch_operands = 0 : i64, tpu.core_type = #tpu.core_type<tc>, window_params = [{pipeline_mode = #tpu.pipeline_mode<synchronous>, transform_indices = @transform_0, window_bounds = array<i64: 2, 128>}, {transform_indices = @transform_1, window_bounds = array<i64: 1, 4, 128>}, {transform_indices = @transform_2, window_bounds = array<i64: 1, 4, 128>}]} {
    %c16_i32 = arith.constant 16 : i32
    %0 = arith.muli %arg1, %c16_i32 : i32
    %1 = arith.sitofp %0 : i32 to f32
    %2 = tpu.iota {dimensions = array<i32: 0>} : vector<4x128xi32>
    %3 = arith.sitofp %2 : vector<4x128xi32> to vector<4x128xf32>
    %cst = arith.constant 4.000000e+00 : f32
    %4 = vector.broadcast %cst : f32 to vector<4x128xf32>
    %5 = arith.mulf %3, %4 : vector<4x128xf32>
    %6 = vector.broadcast %1 : f32 to vector<4x128xf32>
    %7 = arith.addf %6, %5 : vector<4x128xf32>
    %c0 = arith.constant 0 : index
    %c0_0 = arith.constant 0 : index
    %8 = vector.load %arg2[%c0, %c0_0] : memref<2x128xf32, #tpu.memory_space<vmem>>, vector<1x128xf32>
    %9 = vector.broadcast %8 : vector<1x128xf32> to vector<4x128xf32>
    %10 = arith.mulf %7, %9 : vector<4x128xf32>
    %c1 = arith.constant 1 : index
    %c0_1 = arith.constant 0 : index
    %11 = vector.load %arg2[%c1, %c0_1] : memref<2x128xf32, #tpu.memory_space<vmem>>, vector<1x128xf32>
    %12 = vector.broadcast %11 : vector<1x128xf32> to vector<4x128xf32>
    %13 = arith.addf %10, %12 : vector<4x128xf32>
    %14 = math.cos %13 : vector<4x128xf32>
    %c0_2 = arith.constant 0 : index
    %c0_3 = arith.constant 0 : index
    %c0_4 = arith.constant 0 : index
    %15 = vector.load %arg3[%c0_2, %c0_3, %c0_4] : memref<1x4x128xf32, #tpu.memory_space<vmem>>, vector<1x4x128xf32>
    %16 = vector.shape_cast %15 : vector<1x4x128xf32> to vector<4x128xf32>
    %17 = vector.shape_cast %14 : vector<4x128xf32> to vector<1x4x128xf32>
    tpu.vector_store %arg3[%c0_2, %c0_3, %c0_4], %17 {strides = array<i32>} : memref<1x4x128xf32, #tpu.memory_space<vmem>>, vector<1x4x128xf32>,
    %18 = math.sin %13 : vector<4x128xf32>
    %c0_5 = arith.constant 0 : index
    %c0_6 = arith.constant 0 : index
    %c0_7 = arith.constant 0 : index
    %19 = vector.load %arg4[%c0_5, %c0_6, %c0_7] : memref<1x4x128xf32, #tpu.memory_space<vmem>>, vector<1x4x128xf32>
    %20 = vector.shape_cast %19 : vector<1x4x128xf32> to vector<4x128xf32>
    %21 = vector.shape_cast %18 : vector<4x128xf32> to vector<1x4x128xf32>
    tpu.vector_store %arg4[%c0_5, %c0_6, %c0_7], %21 {strides = array<i32>} : memref<1x4x128xf32, #tpu.memory_space<vmem>>, vector<1x4x128xf32>,
    return
  }
  func.func @transform_0(%arg0: i32, %arg1: i32) -> (i32, i32) {
    %c0_i32 = arith.constant 0 : i32
    %c0_i32_0 = arith.constant 0 : i32
    %c0_i32_1 = arith.constant 0 : i32
    return %c0_i32, %c0_i32_0 : i32, i32
  }
  func.func @transform_1(%arg0: i32, %arg1: i32) -> (i32, i32, i32) {
    %c0_i32 = arith.constant 0 : i32
    %c0_i32_0 = arith.constant 0 : i32
    return %arg0, %arg1, %c0_i32 : i32, i32, i32
  }
  func.func @transform_2(%arg0: i32, %arg1: i32) -> (i32, i32, i32) {
    %c0_i32 = arith.constant 0 : i32
    %c0_i32_0 = arith.constant 0 : i32
    return %arg0, %arg1, %c0_i32 : i32, i32, i32
  }
}

</mosaic_0001>

<llo_original>
// kernel: rotary_embedding.1
$region0: #{rotary_embedding.1}
  #allocation0 [shape = 'u32[]', space=smem, size = 0x4, offset = 0x4, fixed_abs, tag = 'smem constant byte address 0x4 - core index']
  #allocation1 [shape = 'u32[72,128]{1,0:T(1,128)}', space=vmem, size = 0x9000, scoped, tag = 'internal scratch']
  %s0 = inlined_call_operand.vmem [shape: f32[2,128], index: 0, kind: input, shape index: {}]
  %s1 = inlined_call_operand.vmem [shape: f32[2,4,128], index: 1, kind: output, shape index: {0}]
  %s2 = inlined_call_operand.vmem [shape: f32[2,4,128], index: 2, kind: output, shape index: {1}]
  %3 = xla_tuple %s1, %s2
  %s4 = sld [smem:[#allocation0]]
  $region45: #{rotary_embedding.1} parent=0
    _
  %s6 = ssub.s32 1, %s4
  %s7 = scalar_select 0, %s6, %s4
  loop: start=0, step=1, limit=4
  $region2: #{rotary_embedding.1} parent=0 // loop_pre_header
    _
  $region3: #{rotary_embedding.1} parent=0 // loop_header
    %s9 = sphi 0, %s13
    %p10 = scmp.ge.s32.totalorder %s9, 4
    %s16 = sphi 0, %s28
    %s17 = sphi 0, %s24
    %s18 = sphi 0, %s16
    %s19 = sphi 0, %s17
    %s20 = sphi 0, %s18
    %s21 = sphi 0, %s19
    %s29 = sphi 0, %s29
    %s31 = sphi 0, %s29
    %s32 = sphi 0, %s31
    %s46 = sphi 0, %s32
    %s54 = sphi 0, %s56
    %s57 = sphi 0, %s54
    %s58 = sphi 0, %s57
    %s74 = sphi 0, %s58
    %s82 = sphi 0, %s84
    %s85 = sphi 0, %s82
    %s86 = sphi 0, %s85
    %s102 = sphi 0, %s86
  $region4: #{rotary_embedding.1} parent=0 // loop_header_branch
    %12 = sbr.rel (%p10) target = $region8
  $region5: #{rotary_embedding.1} parent=0 // loop_body
    %s14 = ssub.s32 %s9, 1
    %s15 = ssub.s32 %s9, 2
    %s22 = sadd.s32 1, %s17
    %p23 = scmp.ge.s32.totalorder %s22, 1
    %s24 = scalar_select %p23, 0, %s22
    %s25 = sadd.s32 1, %s16
    %s26 = scalar_select %p23, %s25, %s16
    %p27 = scmp.ge.s32.totalorder %s26, 2
    %s28 = scalar_select %p27, 0, %s26
    %s30 = sadd.s32 %s29, 1
    %p33 = scmp.eq.s32.totalorder %s9, 1
    %p34 = scmp.ne.s32.totalorder %s29, %s31
    %p35 = scmp.eq.s32.totalorder %s9, 0
    %p36 = por %p34, %p35
    %p37 = scmp.ne.s32.totalorder %s29, %s31
    %p38 = scmp.eq.s32.totalorder %s14, 1
    %p39 = por %p37, %p38
    %p40 = scmp.ne.s32.totalorder %s31, %s32
    %p41 = scmp.eq.s32.totalorder %s14, 0
    %p42 = por %p40, %p41
    %p43 = scmp.ne.s32.totalorder %s31, %s32
    %p44 = scmp.eq.s32.totalorder %s15, 1
    %p45 = por %p43, %p44
    %p47 = scmp.ne.s32.totalorder %s32, %s46
    %p48 = scmp.eq.s32.totalorder %s15, 0
    %p49 = por %p47, %p48
    %s50 = ssub.s32 %s16, %s28
    %s51 = ssub.s32 %s17, %s24
    %s52 = sor.u32 %s50, %s51
    %p53 = scmp.eq.s32.totalorder %s52, 0
    %s55 = sadd.s32 %s54, 1
    %s56 = scalar_select %p53, %s54, %s55
    %p59 = pneg %p53
    %p60 = scmp.eq.s32.totalorder %s9, 1
    %p61 = por %p59, %p60
    %p62 = scmp.ne.s32.totalorder %s54, %s57
    %p63 = scmp.eq.s32.totalorder %s9, 0
    %p64 = por %p62, %p63
    %p65 = scmp.ne.s32.totalorder %s54, %s57
    %p66 = scmp.eq.s32.totalorder %s14, 1
    %p67 = por %p65, %p66
    %p68 = scmp.ne.s32.totalorder %s57, %s58
    %p69 = scmp.eq.s32.totalorder %s14, 0
    %p70 = por %p68, %p69
    %p71 = scmp.ne.s32.totalorder %s57, %s58
    %p72 = scmp.eq.s32.totalorder %s15, 1
    %p73 = por %p71, %p72
    %p75 = scmp.ne.s32.totalorder %s58, %s74
    %p76 = scmp.eq.s32.totalorder %s15, 0
    %p77 = por %p75, %p76
    %s78 = ssub.s32 %s16, %s28
    %s79 = ssub.s32 %s17, %s24
    %s80 = sor.u32 %s78, %s79
    %p81 = scmp.eq.s32.totalorder %s80, 0
    %s83 = sadd.s32 %s82, 1
    %s84 = scalar_select %p81, %s82, %s83
    %p87 = pneg %p81
    %p88 = scmp.eq.s32.totalorder %s9, 1
    %p89 = por %p87, %p88
    %p90 = scmp.ne.s32.totalorder %s82, %s85
    %p91 = scmp.eq.s32.totalorder %s9, 0
    %p92 = por %p90, %p91
    %p93 = scmp.ne.s32.totalorder %s82, %s85
    %p94 = scmp.eq.s32.totalorder %s14, 1
    %p95 = por %p93, %p94
    %p96 = scmp.ne.s32.totalorder %s85, %s86
    %p97 = scmp.eq.s32.totalorder %s14, 0
    %p98 = por %p96, %p97
    %p99 = scmp.ne.s32.totalorder %s85, %s86
    %p100 = scmp.eq.s32.totalorder %s15, 1
    %p101 = por %p99, %p100
    %p103 = scmp.ne.s32.totalorder %s86, %s102
    %p104 = scmp.eq.s32.totalorder %s15, 0
    %p105 = por %p103, %p104
    %p106 = scmp.le.s32.totalorder 1, %s9
    %p107 = scmp.lt.s32.totalorder %s9, 3
    %p108 = pnand %p106, %p107
    %p109 = pneg %p108
    // Predicated region
    $region9: #{rotary_embedding.1} parent=5 // pred_check
      _
    $region10: #{rotary_embedding.1} parent=5 // pred_check_branch
      %111 = sbr.rel (%p108) target = $region12
    $region11: #{rotary_embedding.1} parent=5 // pred_region
      %s112 = ssub.s32 %s9, 1
      // Predicated region
      $region13: #{rotary_embedding.1} parent=11 // pred_check
        %p113 = pneg %p42
      $region14: #{rotary_embedding.1} parent=11 // pred_check_branch
        %115 = sbr.rel (%p113) target = $region16
      $region15: #{rotary_embedding.1} parent=11 // pred_region
        _
      $region16: #{rotary_embedding.1} parent=11 // pred_fallthru
        _
    $region12: #{rotary_embedding.1} parent=5 // pred_fallthru
      _
    %p116 = scmp.lt.s32.totalorder %s9, 2
    // Predicated region
    $region17: #{rotary_embedding.1} parent=5 // pred_check
      %p117 = pneg %p116
    $region18: #{rotary_embedding.1} parent=5 // pred_check_branch
      %119 = sbr.rel (%p117) target = $region20
    $region19: #{rotary_embedding.1} parent=5 // pred_region
      _
    $region20: #{rotary_embedding.1} parent=5 // pred_fallthru
      _
    %p120 = scmp.le.s32.totalorder 1, %s9
    %p121 = scmp.lt.s32.totalorder %s9, 3
    %p122 = pnand %p120, %p121
    %p123 = pneg %p122
    // Predicated region
    $region21: #{rotary_embedding.1} parent=5 // pred_check
      _
    $region22: #{rotary_embedding.1} parent=5 // pred_check_branch
      %125 = sbr.rel (%p122) target = $region24
    $region23: #{rotary_embedding.1} parent=5 // pred_region
      %s126 = ssub.s32 %s9, 1
      %p127 = pneg %p42
      %p128 = pneg %p39
      %p129 = pneg %p70
      %p130 = pneg %p67
      %p131 = scmp.lt.s32.totalorder %s18, 1
      %s132 = scalar_select %p131, %s18, 1
      %p133 = scmp.lt.s32.totalorder %s19, 0
      %s134 = scalar_select %p133, %s19, 0
      %s135 = sadd.s32 %s134, %s132
      %s136 = smul.addr %s135, 4
      %s137 = scalar_lea.vmem %s1, %s136
      %p138 = pneg %p98
      %p139 = pneg %p95
      %p140 = scmp.lt.s32.totalorder %s18, 1
      %s141 = scalar_select %p140, %s18, 1
      %p142 = scmp.lt.s32.totalorder %s19, 0
      %s143 = scalar_select %p142, %s19, 0
      %s144 = sadd.s32 %s143, %s141
      %s145 = smul.addr %s144, 4
      %s146 = scalar_lea.vmem %s2, %s145
      %p147 = scmp.lt.s32.totalorder %s18, 1
      %s148 = scalar_select %p147, %s18, 1
      %p149 = scmp.lt.s32.totalorder %s19, 0
      %s150 = scalar_select %p149, %s19, 0
      %s151 = sadd.s32 %s150, %s148
      %s152 = smul.addr %s151, 4
      %s153 = scalar_lea.vmem %s1, %s152
      %p154 = scmp.lt.s32.totalorder %s18, 1
      %s155 = scalar_select %p154, %s18, 1
      %p156 = scmp.lt.s32.totalorder %s19, 0
      %s157 = scalar_select %p156, %s19, 0
      %s158 = sadd.s32 %s157, %s155
      %s159 = smul.addr %s158, 4
      %s160 = scalar_lea.vmem %s2, %s159
      %s161 = smul.u32 %s19, 16
      %s162 = scvt.s32.f32 %s161
      %v163 = vlaneseq
      %v164 = vshrl.u32 %v163, 7
      %v165 = vcvt.s32.f32 %v164
      %v166 = vmul.f32 %v165, 4.0
      %v167 = vstv %s162
      %v168 = vadd.f32 %v167, %v166
      %v169 = vld [vmem:[%s0] sm:$0x1]
      %v170 = vperm.slane %v169, 0
      %v171 = vmul.f32 %v168, %v170
      %v172 = vld [vmem:[%s0 + $0x1] sm:$0x1]
      %v173 = vperm.slane %v172, 0
      %v174 = vadd.f32 %v171, %v173
      %v175 = vand.u32 2147483647, %v174
      %vm176 = vcmp.le.f32.partialorder %v175, 0.7853982
      %vm177 = vcmp.lt.s32.totalorder %v174, 0
      %v178 = vand.u32 %v174, 2139095040
      %v179 = vshrl.u32 %v178, 23
      %v180 = vsub.s32 %v179, 127
      %v181 = vand.u32 2147483647, %v174
      %v182 = vand.u32 %v181, 8388607
      %v183 = vor.u32 %v182, 8388608
      %v184 = vsub.s32 0, %v183
      %v185 = vadd.s32 %v180, 1
      %vm186 = vcmp.gt.s32.totalorder %v185, 0
      %v187 = vsel %vm186, %v185, 0
      %v188 = vshrl.u32 %v187, 5
      %v189 = vand.u32 %v187, 31
      %v190 = vsub.s32 32, %v189
      %v191 = vshrl.u32 683565275, %v190
      %v192 = vshll.u32 683565275, %v189
      %v193 = vshrl.u32 2475754826, %v190
      %v194 = vor.u32 %v192, %v193
      %v195 = vshll.u32 2475754826, %v189
      %v196 = vshrl.u32 2131351028, %v190
      %v197 = vor.u32 %v195, %v196
      %v198 = vshll.u32 2131351028, %v189
      %v199 = vshrl.u32 2102212464, %v190
      %v200 = vor.u32 %v198, %v199
      %v201 = vshll.u32 2102212464, %v189
      %v202 = vshrl.u32 920167782, %v190
      %v203 = vor.u32 %v201, %v202
      %v204 = vshll.u32 920167782, %v189
      %v205 = vshrl.u32 1326507024, %v190
      %v206 = vor.u32 %v204, %v205
      %vm207 = vcmp.lt.s32.totalorder %v188, 1
      %vm208 = vcmp.lt.s32.totalorder %v188, 2
      %vm209 = vcmp.lt.s32.totalorder %v188, 3
      %vm210 = vcmp.lt.s32.totalorder %v188, 4
      %v211 = vsel %vm207, %v191, %v194
      %v212 = vsel %vm210, %v200, 2102212464
      %v213 = vsel %vm209, %v197, %v212
      %v214 = vsel %vm208, %v211, %v213
      %v215 = vsel %vm207, %v194, %v197
      %v216 = vsel %vm210, %v203, 920167782
      %v217 = vsel %vm209, %v200, %v216
      %v218 = vsel %vm208, %v215, %v217
      %v219 = vsel %vm207, %v197, %v200
      %v220 = vsel %vm210, %v206, 1326507024
      %v221 = vsel %vm209, %v203, %v220
      %v222 = vsel %vm208, %v219, %v221
      %v223 = vshll.u32 %v183, 8
      %v224 = vand.u32 %v223, 65535
      %v225 = vshrl.u32 %v223, 16
      %v226 = vand.u32 %v222, 65535
      %v227 = vshrl.u32 %v222, 16
      %v228 = vmul.u32 %v224, %v226
      %v229 = vmul.u32 %v224, %v227
      %v230 = vmul.u32 %v225, %v226
      %v231 = vmul.u32 %v225, %v227
      %v232 = vshll.u32 %v229, 16
      %v233 = vshrl.u32 %v229, 16
      %v234 = vshll.u32 %v230, 16
      %v235 = vshrl.u32 %v230, 16
      %vm236 = vc.u32 %v228, %v232
      %v237 = vsel %vm236, 1, 0
      %v238 = vadd.s32 %v228, %v232
      %v239 = vadd.s32 %v231, %v237
      %vm240 = vc.u32 %v238, %v234
      %v241 = vsel %vm240, 1, 0
      %v242 = vadd.s32 %v238, %v234
      %v243 = vadd.s32 %v239, %v241
      %v244 = vadd.s32 %v243, %v233
      %v245 = vadd.s32 %v244, %v235
      %v246 = vand.u32 %v223, 65535
      %v247 = vshrl.u32 %v223, 16
      %v248 = vand.u32 %v218, 65535
      %v249 = vshrl.u32 %v218, 16
      %v250 = vmul.u32 %v246, %v248
      %v251 = vmul.u32 %v246, %v249
      %v252 = vmul.u32 %v247, %v248
      %v253 = vmul.u32 %v247, %v249
      %v254 = vshll.u32 %v251, 16
      %v255 = vshrl.u32 %v251, 16
      %v256 = vshll.u32 %v252, 16
      %v257 = vshrl.u32 %v252, 16
      %vm258 = vc.u32 %v250, %v254
      %v259 = vsel %vm258, 1, 0
      %v260 = vadd.s32 %v250, %v254
      %v261 = vadd.s32 %v253, %v259
      %vm262 = vc.u32 %v260, %v256
      %v263 = vsel %vm262, 1, 0
      %v264 = vadd.s32 %v260, %v256
      %v265 = vadd.s32 %v261, %v263
      %v266 = vadd.s32 %v265, %v255
      %v267 = vadd.s32 %v266, %v257
      %v268 = vmul.u32 %v223, %v214
      %v269 = vadd.s32 %v245, %v264
      %vm270 = vc.u32 %v245, %v264
      %v271 = vadd.s32 %v267, 1
      %v272 = vsel %vm270, %v271, %v267
      %v273 = vadd.s32 %v268, %v272
      %v274 = vadd.s32 %v273, 536870912
      %v275 = vshrl.u32 %v274, 30
      %v276 = vshll.u32 %v275, 30
      %v277 = vsub.s32 %v273, %v276
      %vm278 = vcmp.lt.s32.totalorder %v277, 0
      %v279 = vsub.s32 0, %v277
      %v280 = vsel %vm278, %v279, %v277
      %v281 = vclz %v280
      %v282 = vsub.s32 %v281, 2
      %vm283 = vcmp.gt.s32.totalorder 0, %v282
      %v284 = vsel %vm283, 0, %v282
      %v285 = vsub.s32 32, %v284
      %v286 = vshll.u32 %v277, %v284
      %v287 = vshrl.u32 %v269, %v285
      %v288 = vor.u32 %v286, %v287
      %v289 = vsub.s32 4294967266, %v284
      %v290 = vadd.s32 %v289, 127
      %v291 = vshll.u32 %v290, 23
      %v292 = vor.u32 4788187, %v291
      %v293 = vand.u32 2147483647, %v292
      %v295 = vcvt.s32.f32 %v288
      %v296 = vmul.f32 %v295, %v293
      %v297 = vxor.u32 %v296, 2147483648
      %v298 = vsel %vm177, %v297, %v296
      %v299 = vsub.s32 4, %v275
      %v300 = vsel %vm177, %v299, %v275
      %v301 = vsel %vm176, %v174, %v298
      %v302 = vsel %vm176, 0, %v300
      %v303 = vmul.f32 %v301, %v301
      %v304 = vmul.f32 %v303, -0.001358992
      %v305 = vadd.f32 %v304, 0.041655596
      %v306 = vmul.f32 %v303, %v305
      %v307 = vadd.f32 %v306, -0.4999988
      %v308 = vmul.f32 %v303, %v307
      %v309 = vadd.f32 1.0, %v308
      %v310 = vmul.f32 %v301, %v301
      %v311 = vmul.f32 %v310, -0.00019511016
      %v312 = vadd.f32 %v311, 0.008332121
      %v313 = vmul.f32 %v310, %v312
      %v314 = vadd.f32 %v313, -0.16666654
      %v315 = vmul.f32 %v310, %v314
      %v316 = vadd.f32 %v315, 1.0
      %v317 = vmul.f32 %v316, %v301
      %vm318 = vweird.f32 %v174
      %v319 = vand.u32 %v302, 3
      %vm320 = vcmp.lt.s32.totalorder %v319, 2
      %vm321 = vcmp.eq.s32.totalorder %v319, 0
      %v322 = vxor.u32 %v317, 2147483648
      %v323 = vsel %vm321, %v309, %v322
      %vm324 = vcmp.eq.s32.totalorder %v319, 2
      %v325 = vxor.u32 %v309, 2147483648
      %v326 = vsel %vm324, %v325, %v317
      %v327 = vsel %vm320, %v323, %v326
      %v328 = vsel %vm318, nan, %v327
      %329 = vst [vmem:[%s153] sm:$0xf] %v328
      %v330 = vand.u32 2147483647, %v174
      %vm331 = vcmp.le.f32.partialorder %v330, 0.7853982
      %vm332 = vcmp.lt.s32.totalorder %v174, 0
      %v333 = vand.u32 %v174, 2139095040
      %v334 = vshrl.u32 %v333, 23
      %v335 = vsub.s32 %v334, 127
      %v336 = vand.u32 2147483647, %v174
      %v337 = vand.u32 %v336, 8388607
      %v338 = vor.u32 %v337, 8388608
      %v339 = vsub.s32 0, %v338
      %v340 = vadd.s32 %v335, 1
      %vm341 = vcmp.gt.s32.totalorder %v340, 0
      %v342 = vsel %vm341, %v340, 0
      %v343 = vshrl.u32 %v342, 5
      %v344 = vand.u32 %v342, 31
      %v345 = vsub.s32 32, %v344
      %v346 = vshrl.u32 683565275, %v345
      %v347 = vshll.u32 683565275, %v344
      %v348 = vshrl.u32 2475754826, %v345
      %v349 = vor.u32 %v347, %v348
      %v350 = vshll.u32 2475754826, %v344
      %v351 = vshrl.u32 2131351028, %v345
      %v352 = vor.u32 %v350, %v351
      %v353 = vshll.u32 2131351028, %v344
      %v354 = vshrl.u32 2102212464, %v345
      %v355 = vor.u32 %v353, %v354
      %v356 = vshll.u32 2102212464, %v344
      %v357 = vshrl.u32 920167782, %v345
      %v358 = vor.u32 %v356, %v357
      %v359 = vshll.u32 920167782, %v344
      %v360 = vshrl.u32 1326507024, %v345
      %v361 = vor.u32 %v359, %v360
      %vm362 = vcmp.lt.s32.totalorder %v343, 1
      %vm363 = vcmp.lt.s32.totalorder %v343, 2
      %vm364 = vcmp.lt.s32.totalorder %v343, 3
      %vm365 = vcmp.lt.s32.totalorder %v343, 4
      %v366 = vsel %vm362, %v346, %v349
      %v367 = vsel %vm365, %v355, 2102212464
      %v368 = vsel %vm364, %v352, %v367
      %v369 = vsel %vm363, %v366, %v368
      %v370 = vsel %vm362, %v349, %v352
      %v371 = vsel %vm365, %v358, 920167782
      %v372 = vsel %vm364, %v355, %v371
      %v373 = vsel %vm363, %v370, %v372
      %v374 = vsel %vm362, %v352, %v355
      %v375 = vsel %vm365, %v361, 1326507024
      %v376 = vsel %vm364, %v358, %v375
      %v377 = vsel %vm363, %v374, %v376
      %v378 = vshll.u32 %v338, 8
      %v379 = vand.u32 %v378, 65535
      %v380 = vshrl.u32 %v378, 16
      %v381 = vand.u32 %v377, 65535
      %v382 = vshrl.u32 %v377, 16
      %v383 = vmul.u32 %v379, %v381
      %v384 = vmul.u32 %v379, %v382
      %v385 = vmul.u32 %v380, %v381
      %v386 = vmul.u32 %v380, %v382
      %v387 = vshll.u32 %v384, 16
      %v388 = vshrl.u32 %v384, 16
      %v389 = vshll.u32 %v385, 16
      %v390 = vshrl.u32 %v385, 16
      %vm391 = vc.u32 %v383, %v387
      %v392 = vsel %vm391, 1, 0
      %v393 = vadd.s32 %v383, %v387
      %v394 = vadd.s32 %v386, %v392
      %vm395 = vc.u32 %v393, %v389
      %v396 = vsel %vm395, 1, 0
      %v397 = vadd.s32 %v393, %v389
      %v398 = vadd.s32 %v394, %v396
      %v399 = vadd.s32 %v398, %v388
      %v400 = vadd.s32 %v399, %v390
      %v401 = vand.u32 %v378, 65535
      %v402 = vshrl.u32 %v378, 16
      %v403 = vand.u32 %v373, 65535
      %v404 = vshrl.u32 %v373, 16
      %v405 = vmul.u32 %v401, %v403
      %v406 = vmul.u32 %v401, %v404
      %v407 = vmul.u32 %v402, %v403
      %v408 = vmul.u32 %v402, %v404
      %v409 = vshll.u32 %v406, 16
      %v410 = vshrl.u32 %v406, 16
      %v411 = vshll.u32 %v407, 16
      %v412 = vshrl.u32 %v407, 16
      %vm413 = vc.u32 %v405, %v409
      %v414 = vsel %vm413, 1, 0
      %v415 = vadd.s32 %v405, %v409
      %v416 = vadd.s32 %v408, %v414
      %vm417 = vc.u32 %v415, %v411
      %v418 = vsel %vm417, 1, 0
      %v419 = vadd.s32 %v415, %v411
      %v420 = vadd.s32 %v416, %v418
      %v421 = vadd.s32 %v420, %v410
      %v422 = vadd.s32 %v421, %v412
      %v423 = vmul.u32 %v378, %v369
      %v424 = vadd.s32 %v400, %v419
      %vm425 = vc.u32 %v400, %v419
      %v426 = vadd.s32 %v422, 1
      %v427 = vsel %vm425, %v426, %v422
      %v428 = vadd.s32 %v423, %v427
      %v429 = vadd.s32 %v428, 536870912
      %v430 = vshrl.u32 %v429, 30
      %v431 = vshll.u32 %v430, 30
      %v432 = vsub.s32 %v428, %v431
      %vm433 = vcmp.lt.s32.totalorder %v432, 0
      %v434 = vsub.s32 0, %v432
      %v435 = vsel %vm433, %v434, %v432
      %v436 = vclz %v435
      %v437 = vsub.s32 %v436, 2
      %vm438 = vcmp.gt.s32.totalorder 0, %v437
      %v439 = vsel %vm438, 0, %v437
      %v440 = vsub.s32 32, %v439
      %v441 = vshll.u32 %v432, %v439
      %v442 = vshrl.u32 %v424, %v440
      %v443 = vor.u32 %v441, %v442
      %v444 = vsub.s32 4294967266, %v439
      %v445 = vadd.s32 %v444, 127
      %v446 = vshll.u32 %v445, 23
      %v447 = vor.u32 4788187, %v446
      %v448 = vand.u32 2147483647, %v447
      %v450 = vcvt.s32.f32 %v443
      %v451 = vmul.f32 %v450, %v448
      %v452 = vxor.u32 %v451, 2147483648
      %v453 = vsel %vm332, %v452, %v451
      %v454 = vsub.s32 4, %v430
      %v455 = vsel %vm332, %v454, %v430
      %v456 = vsel %vm331, %v174, %v453
      %v457 = vsel %vm331, 0, %v455
      %v458 = vmul.f32 %v456, %v456
      %v459 = vmul.f32 %v458, -0.001358992
      %v460 = vadd.f32 %v459, 0.041655596
      %v461 = vmul.f32 %v458, %v460
      %v462 = vadd.f32 %v461, -0.4999988
      %v463 = vmul.f32 %v458, %v462
      %v464 = vadd.f32 1.0, %v463
      %v465 = vmul.f32 %v456, %v456
      %v466 = vmul.f32 %v465, -0.00019511016
      %v467 = vadd.f32 %v466, 0.008332121
      %v468 = vmul.f32 %v465, %v467
      %v469 = vadd.f32 %v468, -0.16666654
      %v470 = vmul.f32 %v465, %v469
      %v471 = vadd.f32 %v470, 1.0
      %v472 = vmul.f32 %v471, %v456
      %vm473 = vweird.f32 %v174
      %v474 = vadd.s32 %v457, 3
      %v475 = vand.u32 %v474, 3
      %vm476 = vcmp.lt.s32.totalorder %v475, 2
      %vm477 = vcmp.eq.s32.totalorder %v475, 0
      %v478 = vxor.u32 %v472, 2147483648
      %v479 = vsel %vm477, %v464, %v478
      %vm480 = vcmp.eq.s32.totalorder %v475, 2
      %v481 = vxor.u32 %v464, 2147483648
      %v482 = vsel %vm480, %v481, %v472
      %v483 = vsel %vm476, %v479, %v482
      %v484 = vsel %vm473, nan, %v483
      %485 = vst [vmem:[%s160] sm:$0xf] %v484
      %p486 = scmp.lt.s32.totalorder %s18, 1
      %s487 = scalar_select %p486, %s18, 1
      %p488 = scmp.lt.s32.totalorder %s19, 0
      %s489 = scalar_select %p488, %s19, 0
      %s490 = sadd.s32 %s489, %s487
      %s491 = smul.addr %s490, 4
      %s492 = scalar_lea.vmem %s1, %s491
      %p493 = scmp.lt.s32.totalorder %s18, 1
      %s494 = scalar_select %p493, %s18, 1
      %p495 = scmp.lt.s32.totalorder %s19, 0
      %s496 = scalar_select %p495, %s19, 0
      %s497 = sadd.s32 %s496, %s494
      %s498 = smul.addr %s497, 4
      %s499 = scalar_lea.vmem %s2, %s498
      // Predicated region
      $region25: #{rotary_embedding.1} parent=23 // pred_check
        %p500 = pneg %p67
      $region26: #{rotary_embedding.1} parent=23 // pred_check_branch
        %502 = sbr.rel (%p500) target = $region28
      $region27: #{rotary_embedding.1} parent=23 // pred_region
        _
      $region28: #{rotary_embedding.1} parent=23 // pred_fallthru
        _
      // Predicated region
      $region29: #{rotary_embedding.1} parent=23 // pred_check
        %p503 = pneg %p95
      $region30: #{rotary_embedding.1} parent=23 // pred_check_branch
        %505 = sbr.rel (%p503) target = $region32
      $region31: #{rotary_embedding.1} parent=23 // pred_region
        _
      $region32: #{rotary_embedding.1} parent=23 // pred_fallthru
        _
    $region24: #{rotary_embedding.1} parent=5 // pred_fallthru
      _
    %p506 = scmp.le.s32.totalorder 2, %s9
    // Predicated region
    $region33: #{rotary_embedding.1} parent=5 // pred_check
      %p507 = pneg %p506
    $region34: #{rotary_embedding.1} parent=5 // pred_check_branch
      %509 = sbr.rel (%p507) target = $region36
    $region35: #{rotary_embedding.1} parent=5 // pred_region
      %s510 = ssub.s32 %s9, 2
      // Predicated region
      $region37: #{rotary_embedding.1} parent=35 // pred_check
        %p511 = pneg %p73
      $region38: #{rotary_embedding.1} parent=35 // pred_check_branch
        %513 = sbr.rel (%p511) target = $region40
      $region39: #{rotary_embedding.1} parent=35 // pred_region
        %p514 = scmp.lt.s32.totalorder %s20, 1
        %s515 = scalar_select %p514, %s20, 1
        %p516 = scmp.lt.s32.totalorder %s21, 0
        %s517 = scalar_select %p516, %s21, 0
        %s518 = sadd.s32 %s517, %s515
        %s519 = smul.addr %s518, 4
        %s520 = scalar_lea.vmem %s1, %s519
      $region40: #{rotary_embedding.1} parent=35 // pred_fallthru
        _
      // Predicated region
      $region41: #{rotary_embedding.1} parent=35 // pred_check
        %p521 = pneg %p101
      $region42: #{rotary_embedding.1} parent=35 // pred_check_branch
        %523 = sbr.rel (%p521) target = $region44
      $region43: #{rotary_embedding.1} parent=35 // pred_region
        %p524 = scmp.lt.s32.totalorder %s20, 1
        %s525 = scalar_select %p524, %s20, 1
        %p526 = scmp.lt.s32.totalorder %s21, 0
        %s527 = scalar_select %p526, %s21, 0
        %s528 = sadd.s32 %s527, %s525
        %s529 = smul.addr %s528, 4
        %s530 = scalar_lea.vmem %s2, %s529
      $region44: #{rotary_embedding.1} parent=35 // pred_fallthru
        _
    $region36: #{rotary_embedding.1} parent=5 // pred_fallthru
      _
  $region6: #{rotary_embedding.1} parent=0 // loop_footer
    %s13 = sadd.s32 1, %s9
  $region7: #{rotary_embedding.1} parent=0 // loop_footer_branch
    %8 = sbr.rel target = $region3
  $region8: #{rotary_embedding.1} parent=0 // loop_exit
    _

</llo_original>
